<compile_context>
chip_gen: v7x
topology: tpu7x:2x2x1
jax: 0.10.0
libtpu: 0.0.40
codegen_flags: <defaults>
</compile_context>

<pallas_src>
import math

import jax
import jax.numpy as jnp
from jax.experimental import pallas as pl
from jax.experimental.pallas import tpu as pltpu

_SQRT1_2 = 0.7071067811865476


def _gelu(v):
    # exact (erf) GELU, matching torch.nn.GELU() default
    return 0.5 * v * (1.0 + jax.lax.erf(v * _SQRT1_2))


def _ln_gelu(v, ln_w, ln_b, inv_hw):
    # per-row LayerNorm over the last (HW) axis (one-pass stats), then GELU
    s = jnp.sum(v, axis=-1, keepdims=True)
    s2 = jnp.sum(v * v, axis=-1, keepdims=True)
    mean = s * inv_hw
    var = jnp.maximum(s2 * inv_hw - mean * mean, 0.0)
    vn = (v - mean) * jax.lax.rsqrt(var + 1e-5)
    return _gelu(vn * ln_w + ln_b)


def _make_kernel(bt, nct):
    f32 = jnp.float32
    bf16 = jnp.bfloat16

    def kernel(x_ref, r1_ref, br1_ref, f1_ref, bu1_ref,
               r2_ref, br2_ref, f2_ref, bu2_ref,
               ln_w_ref, ln_b_ref, cw1_ref, cw2_ref, cb_ref,
               o_ref, *scratch):
        _, ct, HW = x_ref.shape
        C = cb_ref.shape[0]
        N = bt * ct
        inv_hw = 1.0 / HW

        x2d = x_ref[...].reshape(N, HW)              # bf16, lane-dense rows

        # ------- branch 1: reduce over W -> fc1 -> expand (block-diag) ------
        g1 = jnp.dot(x2d, r1_ref[...], preferred_element_type=f32) + br1_ref[...]
        g1 = _gelu(g1).astype(bf16)                  # (N, HWr)
        y1 = jnp.dot(g1, f1_ref[...], preferred_element_type=f32) + bu1_ref[...]

        # --- branch 2: reduce over H -> fc2 -> expand, transpose folded in --
        g2 = jnp.dot(x2d, r2_ref[...], preferred_element_type=f32) + br2_ref[...]
        g2 = _gelu(g2).astype(bf16)                  # (N, HWr)
        y2 = jnp.dot(g2, f2_ref[...], preferred_element_type=f32) + bu2_ref[...]

        # ------- per-channel LayerNorm([H, W]) + GELU (no channel concat) ---
        ln_w = ln_w_ref[...]
        ln_b = ln_b_ref[...]
        xn1 = _ln_gelu(y1, ln_w, ln_b, inv_hw).astype(bf16)   # (N, HW)
        xn2 = _ln_gelu(y2, ln_w, ln_b, inv_hw).astype(bf16)

        # ------- 1x1 conv (2C -> C): plain (C, ct) @ (ct, HW) matmuls -------
        cw1 = cw1_ref[0]                             # (C, ct) bf16
        cw2 = cw2_ref[0]
        cb = cb_ref[...]                             # (C, 1) f32

        if bt == 1:
            xn1_rows = [xn1]
            xn2_rows = [xn2]
        else:
            xn1b = xn1.reshape(bt, ct, HW)
            xn2b = xn2.reshape(bt, ct, HW)
            xn1_rows = [xn1b[b] for b in range(bt)]
            xn2_rows = [xn2b[b] for b in range(bt)]

        if nct > 1:
            acc_ref = scratch[0]
            j = pl.program_id(1)

            @pl.when(j == 0)
            def _init():
                acc_ref[...] = jnp.zeros_like(acc_ref)

        for b in range(bt):
            pb = (jnp.dot(cw1, xn1_rows[b], preferred_element_type=f32)
                  + jnp.dot(cw2, xn2_rows[b], preferred_element_type=f32))  # (C, HW)
            if nct == 1:
                # no channel-tile reduction: skip the accumulator round-trip
                o_ref[b] = (pb + cb).astype(o_ref.dtype)
            else:
                acc_ref[b] += pb

        if nct > 1:
            @pl.when(j == nct - 1)
            def _finalize():
                o_ref[...] = (acc_ref[...] + cb).astype(o_ref.dtype)

    return kernel


def se_layer_pallas(x, params, *, bt=1, ct=None, vmem_budget_bytes=40 << 20):
    (w_r1, b_r1, w_fc1, w_up1, b_up1,
     w_r2, b_r2, w_fc2, w_up2, b_up2,
     ln_w, ln_b, conv_w, conv_b) = params

    B, C, H, W = x.shape
    HW = H * W
    Wr = w_r1.shape[0]
    Hr = w_r2.shape[0]
    HWr = w_fc1.shape[0]
    assert HWr == H * Wr == W * Hr

    f32, bf16 = jnp.float32, jnp.bfloat16
    out_dtype = x.dtype
    out_bytes = jnp.dtype(out_dtype).itemsize

    assert B % bt == 0

    def _step_vmem(ct_):
        nct_ = C // ct_
        est = 0
        est += 2 * bt * ct_ * HW * 2            # x block (double-buffered bf16)
        est += 2 * 4 * HW * HWr * 2             # R1/F1/R2/F2 weights (double-buffered)
        est += 2 * 2 * C * ct_ * 2              # conv weight tiles
        est += 2 * bt * C * HW * out_bytes      # output block
        if nct_ > 1:
            est += bt * C * HW * 4              # f32 accumulator
        est += 6 * bt * ct_ * HW * 4            # live f32 intermediates (headroom)
        return est

    if ct is None:
        ct = C
        while (_step_vmem(ct) > vmem_budget_bytes and ct % 2 == 0
               and C % (ct // 2) == 0 and (ct // 2) % 16 == 0):
            ct //= 2
    assert C % ct == 0
    assert ct == C or ct % 16 == 0, "channel tile must be 16-aligned or full C"
    nb, nct = B // bt, C // ct

    # TODO(synk): HW that is not a multiple of 128 falls back to masked partial
    # stores on the output path; pad H*W upstream for such production shapes.

    # ---- one-time parameter re-layout: block-diagonal, fused, lane-dense ----
    eyeH = jnp.eye(H, dtype=f32)
    eyeW = jnp.eye(W, dtype=f32)

    # branch 1 (feature order h*Wr + wr, same as torch's view)
    R1 = jnp.kron(eyeH, w_r1.T)                       # (HW, HWr) reduce-over-W
    U1 = jnp.kron(eyeH, w_up1.T)                      # (HWr, HW) expand-to-W
    F1 = w_fc1.T @ U1                                 # fused fc1 -> up1
    br1 = jnp.tile(b_r1[0], H).reshape(1, HWr)
    bu1 = jnp.tile(b_up1[0], H).reshape(1, HW)

    # branch 2 (feature order w*Hr + hr, same as torch's view; transpose folded)
    R2 = jnp.einsum('wv,rh->hwvr', eyeW, w_r2).reshape(HW, HWr)   # reduce-over-H
    U2 = jnp.einsum('wv,hr->wrhv', eyeW, w_up2).reshape(HWr, HW)  # expand + transpose back
    F2 = w_fc2.T @ U2                                 # fused fc2 -> up2 -> transpose
    br2 = jnp.tile(b_r2[0], W).reshape(1, HWr)
    bu2 = jnp.repeat(b_up2[0], W).reshape(1, HW)

    R1 = R1.astype(bf16); F1 = F1.astype(bf16)
    R2 = R2.astype(bf16); F2 = F2.astype(bf16)
    br1 = br1.astype(f32); bu1 = bu1.astype(f32)
    br2 = br2.astype(f32); bu2 = bu2.astype(f32)

    ln_w_k = ln_w.reshape(1, HW).astype(f32)
    ln_b_k = ln_b.reshape(1, HW).astype(f32)

    # split the 1x1-conv weight per branch and pre-tile its input-channel axis
    cw1_t = conv_w[:, :C].reshape(C, nct, ct).transpose(1, 0, 2).astype(bf16)
    cw2_t = conv_w[:, C:].reshape(C, nct, ct).transpose(1, 0, 2).astype(bf16)
    cb_k = conv_b.reshape(C, 1).astype(f32)

    x_flat = x.reshape(B, C, HW).astype(bf16)         # lane-dense feed

    weights = [R1, br1, F1, bu1, R2, br2, F2, bu2, ln_w_k, ln_b_k]

    def const_spec(a):
        nd = a.ndim
        return pl.BlockSpec(a.shape, lambda b, j, _nd=nd: (0,) * _nd)

    in_specs = [pl.BlockSpec((bt, ct, HW), lambda b, j: (b, j, 0))]
    in_specs += [const_spec(a) for a in weights]
    in_specs += [pl.BlockSpec((1, C, ct), lambda b, j: (j, 0, 0)),
                 pl.BlockSpec((1, C, ct), lambda b, j: (j, 0, 0)),
                 const_spec(cb_k)]

    scratch_shapes = []
    if nct > 1:
        scratch_shapes.append(pltpu.VMEM((bt, C, HW), f32))

    vmem_limit = int(min(max(1.5 * _step_vmem(ct), 32 << 20), 100 << 20))

    out = pl.pallas_call(
        _make_kernel(bt, nct),
        out_shape=jax.ShapeDtypeStruct((B, C, HW), out_dtype),
        grid=(nb, nct),
        in_specs=in_specs,
        out_specs=pl.BlockSpec((bt, C, HW), lambda b, j: (b, 0, 0)),
        scratch_shapes=scratch_shapes,
        compiler_params=pltpu.CompilerParams(
            dimension_semantics=("parallel", "arbitrary"),
            vmem_limit_bytes=vmem_limit),
    )(x_flat, *weights, cw1_t, cw2_t, cb_k)

    return out.reshape(B, C, H, W)


def se_layer_ref(x, params):
    (w_r1, b_r1, w_fc1, w_up1, b_up1,
     w_r2, b_r2, w_fc2, w_up2, b_up2,
     ln_w, ln_b, conv_w, conv_b) = params
    B, C, H, W = x.shape

    x1 = jnp.einsum('bchw,vw->bchv', x, w_r1) + b_r1[0]
    x1 = _gelu(x1).reshape(B, C, -1)
    x1 = x1 @ w_fc1.T
    x1 = x1.reshape(B, C, H, -1) @ w_up1.T + b_up1[0]

    x2 = jnp.swapaxes(x, 2, 3)
    x2 = jnp.einsum('bcwh,vh->bcwv', x2, w_r2) + b_r2[0]
    x2 = _gelu(x2).reshape(B, C, -1)
    x2 = x2 @ w_fc2.T
    x2 = x2.reshape(B, C, W, -1) @ w_up2.T + b_up2[0]
    x2 = jnp.swapaxes(x2, 2, 3)

    xc = jnp.concatenate([x1, x2], axis=1)
    mean = xc.mean(axis=(2, 3), keepdims=True)
    var = ((xc - mean) ** 2).mean(axis=(2, 3), keepdims=True)
    xn = (xc - mean) / jnp.sqrt(var + 1e-5) * ln_w + ln_b
    xn = _gelu(xn)
    y = jnp.einsum('oc,bchw->bohw', conv_w, xn) + conv_b[:, 0][None, :, None, None]
    return y


def make_params(key, C, H, W, reduction=8):
    Wr, Hr = W // reduction, H // reduction
    HWr = H * W // reduction
    ks = jax.random.split(key, 16)

    def lin(kw, kb, out_f, in_f, bias=True):
        bound = 1.0 / math.sqrt(in_f)
        w = jax.random.uniform(kw, (out_f, in_f), jnp.float32, -bound, bound)
        b = (jax.random.uniform(kb, (1, out_f), jnp.float32, -bound, bound)
             if bias else None)
        return w, b

    w_r1, b_r1 = lin(ks[0], ks[1], Wr, W)
    w_fc1, _ = lin(ks[2], ks[2], HWr, HWr, bias=False)
    w_up1, b_up1 = lin(ks[3], ks[4], W, Wr)
    w_r2, b_r2 = lin(ks[5], ks[6], Hr, H)
    w_fc2, _ = lin(ks[7], ks[7], HWr, HWr, bias=False)
    w_up2, b_up2 = lin(ks[8], ks[9], H, Hr)
    ln_w = 1.0 + 0.1 * jax.random.normal(ks[12], (H, W), jnp.float32)
    ln_b = 0.1 * jax.random.normal(ks[13], (H, W), jnp.float32)
    bound = 1.0 / math.sqrt(2 * C)
    conv_w = jax.random.uniform(ks[10], (C, 2 * C), jnp.float32, -bound, bound)
    conv_b = jax.random.uniform(ks[11], (C, 1), jnp.float32, -bound, bound)

    return [w_r1, b_r1, w_fc1, w_up1, b_up1,
            w_r2, b_r2, w_fc2, w_up2, b_up2,
            ln_w, ln_b, conv_w, conv_b]


if __name__ == "__main__":
    configs = [
        # (B, C, H, W, reduction, bt, ct)
        (2, 4, 16, 16, 8, 2, 4),    # bt>1 conv path + nct==1 direct-store path
        (2, 32, 16, 16, 8, 1, 16),  # bt==1 conv path + channel-tile accumulation
    ]
    key = jax.random.PRNGKey(0)
    for (B, C, H, W, red, bt, ct) in configs:
        key, kx, kp = jax.random.split(key, 3)
        x = jax.random.normal(kx, (B, C, H, W), jnp.float32)
        params = make_params(kp, C, H, W, red)

        out = jax.block_until_ready(se_layer_pallas(x, params, bt=bt, ct=ct))
        ref = se_layer_ref(x, params)

        assert out.shape == (B, C, H, W)
        err = float(jnp.max(jnp.abs(out - ref)))
        # bf16 MXU operands (f32 accumulation) vs. f32 reference -> loosened tol.
        assert jnp.allclose(out, ref, atol=5e-2, rtol=5e-2), (
            f"config {(B, C, H, W)}: max abs err {err}")
    print("KERNEL_OK")
</pallas_src>

<mosaic_0001>
module attributes {stable_mosaic.version = 11 : i64} {
  func.func @kernel(%arg0: i32, %arg1: i32, %arg2: memref<2x4x256xbf16, #tpu.memory_space<vmem>>, %arg3: memref<256x32xbf16, #tpu.memory_space<vmem>>, %arg4: memref<1x32xf32, #tpu.memory_space<vmem>>, %arg5: memref<32x256xbf16, #tpu.memory_space<vmem>>, %arg6: memref<1x256xf32, #tpu.memory_space<vmem>>, %arg7: memref<256x32xbf16, #tpu.memory_space<vmem>>, %arg8: memref<1x32xf32, #tpu.memory_space<vmem>>, %arg9: memref<32x256xbf16, #tpu.memory_space<vmem>>, %arg10: memref<1x256xf32, #tpu.memory_space<vmem>>, %arg11: memref<1x256xf32, #tpu.memory_space<vmem>>, %arg12: memref<1x256xf32, #tpu.memory_space<vmem>>, %arg13: memref<1x4x4xbf16, #tpu.memory_space<vmem>>, %arg14: memref<1x4x4xbf16, #tpu.memory_space<vmem>>, %arg15: memref<4x1xf32, #tpu.memory_space<vmem>>, %arg16: memref<2x4x256xf32, #tpu.memory_space<vmem>>) attributes {dimension_semantics = [#tpu.dimension_semantics<parallel>, #tpu.dimension_semantics<arbitrary>], iteration_bounds = array<i64: 1, 1>, scalar_prefetch = 0 : i64, scratch_operands = 0 : i64, tpu.core_type = #tpu.core_type<tc>, window_params = [{transform_indices = @transform_0, window_bounds = array<i64: 2, 4, 256>}, {pipeline_mode = #tpu.pipeline_mode<synchronous>, transform_indices = @transform_1, window_bounds = array<i64: 256, 32>}, {pipeline_mode = #tpu.pipeline_mode<synchronous>, transform_indices = @transform_2, window_bounds = array<i64: 1, 32>}, {pipeline_mode = #tpu.pipeline_mode<synchronous>, transform_indices = @transform_3, window_bounds = array<i64: 32, 256>}, {pipeline_mode = #tpu.pipeline_mode<synchronous>, transform_indices = @transform_4, window_bounds = array<i64: 1, 256>}, {pipeline_mode = #tpu.pipeline_mode<synchronous>, transform_indices = @transform_5, window_bounds = array<i64: 256, 32>}, {pipeline_mode = #tpu.pipeline_mode<synchronous>, transform_indices = @transform_6, window_bounds = array<i64: 1, 32>}, {pipeline_mode = #tpu.pipeline_mode<synchronous>, transform_indices = @transform_7, window_bounds = array<i64: 32, 256>}, {pipeline_mode = #tpu.pipeline_mode<synchronous>, transform_indices = @transform_8, window_bounds = array<i64: 1, 256>}, {pipeline_mode = #tpu.pipeline_mode<synchronous>, transform_indices = @transform_9, window_bounds = array<i64: 1, 256>}, {pipeline_mode = #tpu.pipeline_mode<synchronous>, transform_indices = @transform_10, window_bounds = array<i64: 1, 256>}, {transform_indices = @transform_11, window_bounds = array<i64: 1, 4, 4>}, {transform_indices = @transform_12, window_bounds = array<i64: 1, 4, 4>}, {pipeline_mode = #tpu.pipeline_mode<synchronous>, transform_indices = @transform_13, window_bounds = array<i64: 4, 1>}, {transform_indices = @transform_14, window_bounds = array<i64: 2, 4, 256>}]} {
    %c0 = arith.constant 0 : index
    %c0_0 = arith.constant 0 : index
    %c0_1 = arith.constant 0 : index
    %0 = vector.load %arg2[%c0, %c0_0, %c0_1] : memref<2x4x256xbf16, #tpu.memory_space<vmem>>, vector<2x4x256xbf16>
    %1 = vector.shape_cast %0 : vector<2x4x256xbf16> to vector<8x256xbf16>
    %c0_2 = arith.constant 0 : index
    %c0_3 = arith.constant 0 : index
    %2 = vector.load %arg3[%c0_2, %c0_3] : memref<256x32xbf16, #tpu.memory_space<vmem>>, vector<256x32xbf16>
    %cst = arith.constant dense<0.000000e+00> : vector<8x32xf32>
    %3 = tpu.matmul %1, %2, %cst {dimension_numbers = #tpu.dot_dimension_numbers<[1], [0], [0], [1], [0, 0, 1, 1], [], []>} : vector<8x256xbf16>, vector<256x32xbf16>, vector<8x32xf32> -> vector<8x32xf32>
    %c0_4 = arith.constant 0 : index
    %c0_5 = arith.constant 0 : index
    %4 = vector.load %arg4[%c0_4, %c0_5] : memref<1x32xf32, #tpu.memory_space<vmem>>, vector<1x32xf32>
    %5 = vector.broadcast %4 : vector<1x32xf32> to vector<8x32xf32>
    %6 = arith.addf %3, %5 : vector<8x32xf32>
    %cst_6 = arith.constant 5.000000e-01 : f32
    %7 = vector.broadcast %cst_6 : f32 to vector<8x32xf32>
    %8 = arith.mulf %7, %6 : vector<8x32xf32>
    %cst_7 = arith.constant 0.707106769 : f32
    %9 = vector.broadcast %cst_7 : f32 to vector<8x32xf32>
    %10 = arith.mulf %6, %9 : vector<8x32xf32>
    %11 = math.erf %10 : vector<8x32xf32>
    %cst_8 = arith.constant 1.000000e+00 : f32
    %12 = vector.broadcast %cst_8 : f32 to vector<8x32xf32>
    %13 = arith.addf %12, %11 : vector<8x32xf32>
    %14 = arith.mulf %8, %13 : vector<8x32xf32>
    %15 = arith.truncf %14 : vector<8x32xf32> to vector<8x32xbf16>
    %c0_9 = arith.constant 0 : index
    %c0_10 = arith.constant 0 : index
    %16 = vector.load %arg5[%c0_9, %c0_10] : memref<32x256xbf16, #tpu.memory_space<vmem>>, vector<32x256xbf16>
    %cst_11 = arith.constant dense<0.000000e+00> : vector<8x256xf32>
    %17 = tpu.matmul %15, %16, %cst_11 {dimension_numbers = #tpu.dot_dimension_numbers<[1], [0], [0], [1], [0, 0, 1, 1], [], []>} : vector<8x32xbf16>, vector<32x256xbf16>, vector<8x256xf32> -> vector<8x256xf32>
    %c0_12 = arith.constant 0 : index
    %c0_13 = arith.constant 0 : index
    %18 = vector.load %arg6[%c0_12, %c0_13] : memref<1x256xf32, #tpu.memory_space<vmem>>, vector<1x256xf32>
    %19 = vector.broadcast %18 : vector<1x256xf32> to vector<8x256xf32>
    %20 = arith.addf %17, %19 : vector<8x256xf32>
    %c0_14 = arith.constant 0 : index
    %c0_15 = arith.constant 0 : index
    %21 = vector.load %arg7[%c0_14, %c0_15] : memref<256x32xbf16, #tpu.memory_space<vmem>>, vector<256x32xbf16>
    %cst_16 = arith.constant dense<0.000000e+00> : vector<8x32xf32>
    %22 = tpu.matmul %1, %21, %cst_16 {dimension_numbers = #tpu.dot_dimension_numbers<[1], [0], [0], [1], [0, 0, 1, 1], [], []>} : vector<8x256xbf16>, vector<256x32xbf16>, vector<8x32xf32> -> vector<8x32xf32>
    %c0_17 = arith.constant 0 : index
    %c0_18 = arith.constant 0 : index
    %23 = vector.load %arg8[%c0_17, %c0_18] : memref<1x32xf32, #tpu.memory_space<vmem>>, vector<1x32xf32>
    %24 = vector.broadcast %23 : vector<1x32xf32> to vector<8x32xf32>
    %25 = arith.addf %22, %24 : vector<8x32xf32>
    %cst_19 = arith.constant 5.000000e-01 : f32
    %26 = vector.broadcast %cst_19 : f32 to vector<8x32xf32>
    %27 = arith.mulf %26, %25 : vector<8x32xf32>
    %cst_20 = arith.constant 0.707106769 : f32
    %28 = vector.broadcast %cst_20 : f32 to vector<8x32xf32>
    %29 = arith.mulf %25, %28 : vector<8x32xf32>
    %30 = math.erf %29 : vector<8x32xf32>
    %cst_21 = arith.constant 1.000000e+00 : f32
    %31 = vector.broadcast %cst_21 : f32 to vector<8x32xf32>
    %32 = arith.addf %31, %30 : vector<8x32xf32>
    %33 = arith.mulf %27, %32 : vector<8x32xf32>
    %34 = arith.truncf %33 : vector<8x32xf32> to vector<8x32xbf16>
    %c0_22 = arith.constant 0 : index
    %c0_23 = arith.constant 0 : index
    %35 = vector.load %arg9[%c0_22, %c0_23] : memref<32x256xbf16, #tpu.memory_space<vmem>>, vector<32x256xbf16>
    %cst_24 = arith.constant dense<0.000000e+00> : vector<8x256xf32>
    %36 = tpu.matmul %34, %35, %cst_24 {dimension_numbers = #tpu.dot_dimension_numbers<[1], [0], [0], [1], [0, 0, 1, 1], [], []>} : vector<8x32xbf16>, vector<32x256xbf16>, vector<8x256xf32> -> vector<8x256xf32>
    %c0_25 = arith.constant 0 : index
    %c0_26 = arith.constant 0 : index
    %37 = vector.load %arg10[%c0_25, %c0_26] : memref<1x256xf32, #tpu.memory_space<vmem>>, vector<1x256xf32>
    %38 = vector.broadcast %37 : vector<1x256xf32> to vector<8x256xf32>
    %39 = arith.addf %36, %38 : vector<8x256xf32>
    %c0_27 = arith.constant 0 : index
    %c0_28 = arith.constant 0 : index
    %40 = vector.load %arg11[%c0_27, %c0_28] : memref<1x256xf32, #tpu.memory_space<vmem>>, vector<1x256xf32>
    %c0_29 = arith.constant 0 : index
    %c0_30 = arith.constant 0 : index
    %41 = vector.load %arg12[%c0_29, %c0_30] : memref<1x256xf32, #tpu.memory_space<vmem>>, vector<1x256xf32>
    %cst_31 = arith.constant dense<0.000000e+00> : vector<8xf32>
    %42 = vector.multi_reduction <add>, %20, %cst_31 [1] : vector<8x256xf32> to vector<8xf32>
    %43 = vector.shape_cast %42 : vector<8xf32> to vector<8x1xf32>
    %44 = arith.mulf %20, %20 : vector<8x256xf32>
    %cst_32 = arith.constant dense<0.000000e+00> : vector<8xf32>
    %45 = vector.multi_reduction <add>, %44, %cst_32 [1] : vector<8x256xf32> to vector<8xf32>
    %46 = vector.shape_cast %45 : vector<8xf32> to vector<8x1xf32>
    %cst_33 = arith.constant 3.906250e-03 : f32
    %47 = vector.broadcast %cst_33 : f32 to vector<8x1xf32>
    %48 = arith.mulf %43, %47 : vector<8x1xf32>
    %cst_34 = arith.constant 3.906250e-03 : f32
    %49 = vector.broadcast %cst_34 : f32 to vector<8x1xf32>
    %50 = arith.mulf %46, %49 : vector<8x1xf32>
    %51 = arith.mulf %48, %48 : vector<8x1xf32>
    %52 = arith.subf %50, %51 : vector<8x1xf32>
    %cst_35 = arith.constant 0.000000e+00 : f32
    %53 = vector.broadcast %cst_35 : f32 to vector<8x1xf32>
    %54 = arith.maximumf %52, %53 : vector<8x1xf32>
    %55 = vector.broadcast %48 : vector<8x1xf32> to vector<8x256xf32>
    %56 = arith.subf %20, %55 : vector<8x256xf32>
    %cst_36 = arith.constant 9.99999974E-6 : f32
    %57 = vector.broadcast %cst_36 : f32 to vector<8x1xf32>
    %58 = arith.addf %54, %57 : vector<8x1xf32>
    %59 = math.rsqrt %58 : vector<8x1xf32>
    %60 = vector.broadcast %59 : vector<8x1xf32> to vector<8x256xf32>
    %61 = arith.mulf %56, %60 : vector<8x256xf32>
    %62 = vector.broadcast %40 : vector<1x256xf32> to vector<8x256xf32>
    %63 = arith.mulf %61, %62 : vector<8x256xf32>
    %64 = vector.broadcast %41 : vector<1x256xf32> to vector<8x256xf32>
    %65 = arith.addf %63, %64 : vector<8x256xf32>
    %cst_37 = arith.constant 5.000000e-01 : f32
    %66 = vector.broadcast %cst_37 : f32 to vector<8x256xf32>
    %67 = arith.mulf %66, %65 : vector<8x256xf32>
    %cst_38 = arith.constant 0.707106769 : f32
    %68 = vector.broadcast %cst_38 : f32 to vector<8x256xf32>
    %69 = arith.mulf %65, %68 : vector<8x256xf32>
    %70 = math.erf %69 : vector<8x256xf32>
    %cst_39 = arith.constant 1.000000e+00 : f32
    %71 = vector.broadcast %cst_39 : f32 to vector<8x256xf32>
    %72 = arith.addf %71, %70 : vector<8x256xf32>
    %73 = arith.mulf %67, %72 : vector<8x256xf32>
    %74 = arith.truncf %73 : vector<8x256xf32> to vector<8x256xbf16>
    %cst_40 = arith.constant dense<0.000000e+00> : vector<8xf32>
    %75 = vector.multi_reduction <add>, %39, %cst_40 [1] : vector<8x256xf32> to vector<8xf32>
    %76 = vector.shape_cast %75 : vector<8xf32> to vector<8x1xf32>
    %77 = arith.mulf %39, %39 : vector<8x256xf32>
    %cst_41 = arith.constant dense<0.000000e+00> : vector<8xf32>
    %78 = vector.multi_reduction <add>, %77, %cst_41 [1] : vector<8x256xf32> to vector<8xf32>
    %79 = vector.shape_cast %78 : vector<8xf32> to vector<8x1xf32>
    %cst_42 = arith.constant 3.906250e-03 : f32
    %80 = vector.broadcast %cst_42 : f32 to vector<8x1xf32>
    %81 = arith.mulf %76, %80 : vector<8x1xf32>
    %cst_43 = arith.constant 3.906250e-03 : f32
    %82 = vector.broadcast %cst_43 : f32 to vector<8x1xf32>
    %83 = arith.mulf %79, %82 : vector<8x1xf32>
    %84 = arith.mulf %81, %81 : vector<8x1xf32>
    %85 = arith.subf %83, %84 : vector<8x1xf32>
    %cst_44 = arith.constant 0.000000e+00 : f32
    %86 = vector.broadcast %cst_44 : f32 to vector<8x1xf32>
    %87 = arith.maximumf %85, %86 : vector<8x1xf32>
    %88 = vector.broadcast %81 : vector<8x1xf32> to vector<8x256xf32>
    %89 = arith.subf %39, %88 : vector<8x256xf32>
    %cst_45 = arith.constant 9.99999974E-6 : f32
    %90 = vector.broadcast %cst_45 : f32 to vector<8x1xf32>
    %91 = arith.addf %87, %90 : vector<8x1xf32>
    %92 = math.rsqrt %91 : vector<8x1xf32>
    %93 = vector.broadcast %92 : vector<8x1xf32> to vector<8x256xf32>
    %94 = arith.mulf %89, %93 : vector<8x256xf32>
    %95 = vector.broadcast %40 : vector<1x256xf32> to vector<8x256xf32>
    %96 = arith.mulf %94, %95 : vector<8x256xf32>
    %97 = vector.broadcast %41 : vector<1x256xf32> to vector<8x256xf32>
    %98 = arith.addf %96, %97 : vector<8x256xf32>
    %cst_46 = arith.constant 5.000000e-01 : f32
    %99 = vector.broadcast %cst_46 : f32 to vector<8x256xf32>
    %100 = arith.mulf %99, %98 : vector<8x256xf32>
    %cst_47 = arith.constant 0.707106769 : f32
    %101 = vector.broadcast %cst_47 : f32 to vector<8x256xf32>
    %102 = arith.mulf %98, %101 : vector<8x256xf32>
    %103 = math.erf %102 : vector<8x256xf32>
    %cst_48 = arith.constant 1.000000e+00 : f32
    %104 = vector.broadcast %cst_48 : f32 to vector<8x256xf32>
    %105 = arith.addf %104, %103 : vector<8x256xf32>
    %106 = arith.mulf %100, %105 : vector<8x256xf32>
    %107 = arith.truncf %106 : vector<8x256xf32> to vector<8x256xbf16>
    %c0_49 = arith.constant 0 : index
    %c0_50 = arith.constant 0 : index
    %c0_51 = arith.constant 0 : index
    %108 = vector.load %arg13[%c0_49, %c0_50, %c0_51] : memref<1x4x4xbf16, #tpu.memory_space<vmem>>, vector<1x4x4xbf16>
    %109 = vector.shape_cast %108 : vector<1x4x4xbf16> to vector<4x4xbf16>
    %c0_52 = arith.constant 0 : index
    %c0_53 = arith.constant 0 : index
    %c0_54 = arith.constant 0 : index
    %110 = vector.load %arg14[%c0_52, %c0_53, %c0_54] : memref<1x4x4xbf16, #tpu.memory_space<vmem>>, vector<1x4x4xbf16>
    %111 = vector.shape_cast %110 : vector<1x4x4xbf16> to vector<4x4xbf16>
    %c0_55 = arith.constant 0 : index
    %c0_56 = arith.constant 0 : index
    %112 = vector.load %arg15[%c0_55, %c0_56] : memref<4x1xf32, #tpu.memory_space<vmem>>, vector<4x1xf32>
    %113 = vector.shape_cast %74 : vector<8x256xbf16> to vector<2x4x256xbf16>
    %114 = vector.shape_cast %107 : vector<8x256xbf16> to vector<2x4x256xbf16>
    %115 = vector.extract_strided_slice %113 {offsets = [0, 0, 0], sizes = [1, 4, 256], strides = [1, 1, 1]} : vector<2x4x256xbf16> to vector<1x4x256xbf16>
    %116 = vector.shape_cast %115 : vector<1x4x256xbf16> to vector<4x256xbf16>
    %117 = vector.extract_strided_slice %113 {offsets = [1, 0, 0], sizes = [1, 4, 256], strides = [1, 1, 1]} : vector<2x4x256xbf16> to vector<1x4x256xbf16>
    %118 = vector.shape_cast %117 : vector<1x4x256xbf16> to vector<4x256xbf16>
    %119 = vector.extract_strided_slice %114 {offsets = [0, 0, 0], sizes = [1, 4, 256], strides = [1, 1, 1]} : vector<2x4x256xbf16> to vector<1x4x256xbf16>
    %120 = vector.shape_cast %119 : vector<1x4x256xbf16> to vector<4x256xbf16>
    %121 = vector.extract_strided_slice %114 {offsets = [1, 0, 0], sizes = [1, 4, 256], strides = [1, 1, 1]} : vector<2x4x256xbf16> to vector<1x4x256xbf16>
    %122 = vector.shape_cast %121 : vector<1x4x256xbf16> to vector<4x256xbf16>
    %cst_57 = arith.constant dense<0.000000e+00> : vector<4x256xf32>
    %123 = tpu.matmul %109, %116, %cst_57 {dimension_numbers = #tpu.dot_dimension_numbers<[1], [0], [0], [1], [0, 0, 1, 1], [], []>} : vector<4x4xbf16>, vector<4x256xbf16>, vector<4x256xf32> -> vector<4x256xf32>
    %cst_58 = arith.constant dense<0.000000e+00> : vector<4x256xf32>
    %124 = tpu.matmul %111, %120, %cst_58 {dimension_numbers = #tpu.dot_dimension_numbers<[1], [0], [0], [1], [0, 0, 1, 1], [], []>} : vector<4x4xbf16>, vector<4x256xbf16>, vector<4x256xf32> -> vector<4x256xf32>
    %125 = arith.addf %123, %124 : vector<4x256xf32>
    %126 = vector.broadcast %112 : vector<4x1xf32> to vector<4x256xf32>
    %127 = arith.addf %125, %126 : vector<4x256xf32>
    %c0_59 = arith.constant 0 : index
    %c0_60 = arith.constant 0 : index
    %c0_61 = arith.constant 0 : index
    %128 = vector.load %arg16[%c0_59, %c0_60, %c0_61] : memref<2x4x256xf32, #tpu.memory_space<vmem>>, vector<1x4x256xf32>
    %129 = vector.shape_cast %128 : vector<1x4x256xf32> to vector<4x256xf32>
    %130 = vector.shape_cast %127 : vector<4x256xf32> to vector<1x4x256xf32>
    tpu.vector_store %arg16[%c0_59, %c0_60, %c0_61], %130 {strides = array<i32>} : memref<2x4x256xf32, #tpu.memory_space<vmem>>, vector<1x4x256xf32>,
    %cst_62 = arith.constant dense<0.000000e+00> : vector<4x256xf32>
    %131 = tpu.matmul %109, %118, %cst_62 {dimension_numbers = #tpu.dot_dimension_numbers<[1], [0], [0], [1], [0, 0, 1, 1], [], []>} : vector<4x4xbf16>, vector<4x256xbf16>, vector<4x256xf32> -> vector<4x256xf32>
    %cst_63 = arith.constant dense<0.000000e+00> : vector<4x256xf32>
    %132 = tpu.matmul %111, %122, %cst_63 {dimension_numbers = #tpu.dot_dimension_numbers<[1], [0], [0], [1], [0, 0, 1, 1], [], []>} : vector<4x4xbf16>, vector<4x256xbf16>, vector<4x256xf32> -> vector<4x256xf32>
    %133 = arith.addf %131, %132 : vector<4x256xf32>
    %134 = vector.broadcast %112 : vector<4x1xf32> to vector<4x256xf32>
    %135 = arith.addf %133, %134 : vector<4x256xf32>
    %c1 = arith.constant 1 : index
    %c0_64 = arith.constant 0 : index
    %c0_65 = arith.constant 0 : index
    %136 = vector.load %arg16[%c1, %c0_64, %c0_65] : memref<2x4x256xf32, #tpu.memory_space<vmem>>, vector<1x4x256xf32>
    %137 = vector.shape_cast %136 : vector<1x4x256xf32> to vector<4x256xf32>
    %138 = vector.shape_cast %135 : vector<4x256xf32> to vector<1x4x256xf32>
    tpu.vector_store %arg16[%c1, %c0_64, %c0_65], %138 {strides = array<i32>} : memref<2x4x256xf32, #tpu.memory_space<vmem>>, vector<1x4x256xf32>,
    return
  }
  func.func @transform_0(%arg0: i32, %arg1: i32) -> (i32, i32, i32) {
    %c0_i32 = arith.constant 0 : i32
    %c0_i32_0 = arith.constant 0 : i32
    return %arg0, %arg1, %c0_i32 : i32, i32, i32
  }
  func.func @transform_1(%arg0: i32, %arg1: i32) -> (i32, i32) {
    %c0_i32 = arith.constant 0 : i32
    %c0_i32_0 = arith.constant 0 : i32
    %c0_i32_1 = arith.constant 0 : i32
    return %c0_i32, %c0_i32_0 : i32, i32
  }
  func.func @transform_2(%arg0: i32, %arg1: i32) -> (i32, i32) {
    %c0_i32 = arith.constant 0 : i32
    %c0_i32_0 = arith.constant 0 : i32
    %c0_i32_1 = arith.constant 0 : i32
    return %c0_i32, %c0_i32_0 : i32, i32
  }
  func.func @transform_3(%arg0: i32, %arg1: i32) -> (i32, i32) {
    %c0_i32 = arith.constant 0 : i32
    %c0_i32_0 = arith.constant 0 : i32
    %c0_i32_1 = arith.constant 0 : i32
    return %c0_i32, %c0_i32_0 : i32, i32
  }
  func.func @transform_4(%arg0: i32, %arg1: i32) -> (i32, i32) {
    %c0_i32 = arith.constant 0 : i32
    %c0_i32_0 = arith.constant 0 : i32
    %c0_i32_1 = arith.constant 0 : i32
    return %c0_i32, %c0_i32_0 : i32, i32
  }
  func.func @transform_5(%arg0: i32, %arg1: i32) -> (i32, i32) {
    %c0_i32 = arith.constant 0 : i32
    %c0_i32_0 = arith.constant 0 : i32
    %c0_i32_1 = arith.constant 0 : i32
    return %c0_i32, %c0_i32_0 : i32, i32
  }
  func.func @transform_6(%arg0: i32, %arg1: i32) -> (i32, i32) {
    %c0_i32 = arith.constant 0 : i32
    %c0_i32_0 = arith.constant 0 : i32
    %c0_i32_1 = arith.constant 0 : i32
    return %c0_i32, %c0_i32_0 : i32, i32
  }
  func.func @transform_7(%arg0: i32, %arg1: i32) -> (i32, i32) {
    %c0_i32 = arith.constant 0 : i32
    %c0_i32_0 = arith.constant 0 : i32
    %c0_i32_1 = arith.constant 0 : i32
    return %c0_i32, %c0_i32_0 : i32, i32
  }
  func.func @transform_8(%arg0: i32, %arg1: i32) -> (i32, i32) {
    %c0_i32 = arith.constant 0 : i32
    %c0_i32_0 = arith.constant 0 : i32
    %c0_i32_1 = arith.constant 0 : i32
    return %c0_i32, %c0_i32_0 : i32, i32
  }
  func.func @transform_9(%arg0: i32, %arg1: i32) -> (i32, i32) {
    %c0_i32 = arith.constant 0 : i32
    %c0_i32_0 = arith.constant 0 : i32
    %c0_i32_1 = arith.constant 0 : i32
    return %c0_i32, %c0_i32_0 : i32, i32
  }
  func.func @transform_10(%arg0: i32, %arg1: i32) -> (i32, i32) {
    %c0_i32 = arith.constant 0 : i32
    %c0_i32_0 = arith.constant 0 : i32
    %c0_i32_1 = arith.constant 0 : i32
    return %c0_i32, %c0_i32_0 : i32, i32
  }
  func.func @transform_11(%arg0: i32, %arg1: i32) -> (i32, i32, i32) {
    %c0_i32 = arith.constant 0 : i32
    %c0_i32_0 = arith.constant 0 : i32
    %c0_i32_1 = arith.constant 0 : i32
    return %arg1, %c0_i32, %c0_i32_0 : i32, i32, i32
  }
  func.func @transform_12(%arg0: i32, %arg1: i32) -> (i32, i32, i32) {
    %c0_i32 = arith.constant 0 : i32
    %c0_i32_0 = arith.constant 0 : i32
    %c0_i32_1 = arith.constant 0 : i32
    return %arg1, %c0_i32, %c0_i32_0 : i32, i32, i32
  }
  func.func @transform_13(%arg0: i32, %arg1: i32) -> (i32, i32) {
    %c0_i32 = arith.constant 0 : i32
    %c0_i32_0 = arith.constant 0 : i32
    %c0_i32_1 = arith.constant 0 : i32
    return %c0_i32, %c0_i32_0 : i32, i32
  }
  func.func @transform_14(%arg0: i32, %arg1: i32) -> (i32, i32, i32) {
    %c0_i32 = arith.constant 0 : i32
    %c0_i32_0 = arith.constant 0 : i32
    %c0_i32_1 = arith.constant 0 : i32
    return %arg0, %c0_i32, %c0_i32_0 : i32, i32, i32
  }
}

</mosaic_0001>

<llo_original>
// kernel: tpu_custom_call.1
$region0: #{tpu_custom_call.1}
  #allocation0 [shape = 'u32[]', space=smem, size = 0x4, offset = 0x4, fixed_abs, tag = 'smem constant byte address 0x4 - core index']
  #allocation1 [shape = 'u32[144,128]{1,0:T(1,128)}', space=vmem, size = 0x12000, scoped, tag = 'internal scratch']
  %s0 = inlined_call_operand.vmem [shape: bf16[2,4,256], index: 0, kind: input, shape index: {}]
  %s1 = inlined_call_operand.vmem [shape: bf16[256,32], index: 1, kind: input, shape index: {}]
  %s2 = inlined_call_operand.vmem [shape: f32[1,32], index: 2, kind: input, shape index: {}]
  %s3 = inlined_call_operand.vmem [shape: bf16[32,256], index: 3, kind: input, shape index: {}]
  %s4 = inlined_call_operand.vmem [shape: f32[1,256], index: 4, kind: input, shape index: {}]
  %s5 = inlined_call_operand.vmem [shape: bf16[256,32], index: 5, kind: input, shape index: {}]
  %s6 = inlined_call_operand.vmem [shape: f32[1,32], index: 6, kind: input, shape index: {}]
  %s7 = inlined_call_operand.vmem [shape: bf16[32,256], index: 7, kind: input, shape index: {}]
  %s8 = inlined_call_operand.vmem [shape: f32[1,256], index: 8, kind: input, shape index: {}]
  %s9 = inlined_call_operand.vmem [shape: f32[1,256], index: 9, kind: input, shape index: {}]
  %s10 = inlined_call_operand.vmem [shape: f32[1,256], index: 10, kind: input, shape index: {}]
  %s11 = inlined_call_operand.vmem [shape: bf16[1,4,4], index: 11, kind: input, shape index: {}]
  %s12 = inlined_call_operand.vmem [shape: bf16[1,4,4], index: 12, kind: input, shape index: {}]
  %s13 = inlined_call_operand.vmem [shape: f32[4,1], index: 13, kind: input, shape index: {}]
  %s14 = inlined_call_operand.hbm [shape: f32[2,4,256], index: 14, kind: output, shape index: {}]
  %s15 = sld [smem:[#allocation0]]
  $region66: #{tpu_custom_call.1} parent=0
    _
  %s17 = ssub.s32 1, %s15
  %s18 = scalar_select 0, %s17, %s15
  $region1: #{tpu_custom_call.1} parent=0
    #allocation2 [shape = 'u8[8192]{0}', space=vmem, size = 0x2000, scoped, tag = 'output window, operand 0, single buffered']
    #allocation3 [shape = 's32[1]{0}', space=sflag, size = 0x4, scoped, tag = 'scoped memory for tpu_custom_call.1']
    %19 = vsyncpa [#allocation3], 0
    // Predicated region
    $region2: #{tpu_custom_call.1} parent=1 // pred_check
      _
    $region3: #{tpu_custom_call.1} parent=1 // pred_check_branch
      %21 = sbr.rel (0) target = $region5
    $region4: #{tpu_custom_call.1} parent=1 // pred_region
      _
    $region5: #{tpu_custom_call.1} parent=1 // pred_fallthru
      _
    // Predicated region
    $region6: #{tpu_custom_call.1} parent=1 // pred_check
      _
    $region7: #{tpu_custom_call.1} parent=1 // pred_check_branch
      %23 = sbr.rel (0) target = $region9
    $region8: #{tpu_custom_call.1} parent=1 // pred_region
      _
    $region9: #{tpu_custom_call.1} parent=1 // pred_fallthru
      _
    // Predicated region
    $region10: #{tpu_custom_call.1} parent=1 // pred_check
      _
    $region11: #{tpu_custom_call.1} parent=1 // pred_check_branch
      %25 = sbr.rel (0) target = $region13
    $region12: #{tpu_custom_call.1} parent=1 // pred_region
      _
    $region13: #{tpu_custom_call.1} parent=1 // pred_fallthru
      _
    // Predicated region
    $region14: #{tpu_custom_call.1} parent=1 // pred_check
      _
    $region15: #{tpu_custom_call.1} parent=1 // pred_check_branch
      %27 = sbr.rel (0) target = $region17
    $region16: #{tpu_custom_call.1} parent=1 // pred_region
      _
    $region17: #{tpu_custom_call.1} parent=1 // pred_fallthru
      _
    // Predicated region
    $region18: #{tpu_custom_call.1} parent=1 // pred_check
      _
    $region19: #{tpu_custom_call.1} parent=1 // pred_check_branch
      %29 = sbr.rel (0) target = $region21
    $region20: #{tpu_custom_call.1} parent=1 // pred_region
      _
    $region21: #{tpu_custom_call.1} parent=1 // pred_fallthru
      _
    // Predicated region
    $region22: #{tpu_custom_call.1} parent=1 // pred_check
      _
    $region23: #{tpu_custom_call.1} parent=1 // pred_check_branch
      %31 = sbr.rel (0) target = $region25
    $region24: #{tpu_custom_call.1} parent=1 // pred_region
      _
    $region25: #{tpu_custom_call.1} parent=1 // pred_fallthru
      _
    // Predicated region
    $region26: #{tpu_custom_call.1} parent=1 // pred_check
      _
    $region27: #{tpu_custom_call.1} parent=1 // pred_check_branch
      %33 = sbr.rel (0) target = $region29
    $region28: #{tpu_custom_call.1} parent=1 // pred_region
      _
    $region29: #{tpu_custom_call.1} parent=1 // pred_fallthru
      _
    // Predicated region
    $region30: #{tpu_custom_call.1} parent=1 // pred_check
      _
    $region31: #{tpu_custom_call.1} parent=1 // pred_check_branch
      %35 = sbr.rel (0) target = $region33
    $region32: #{tpu_custom_call.1} parent=1 // pred_region
      _
    $region33: #{tpu_custom_call.1} parent=1 // pred_fallthru
      _
    // Predicated region
    $region34: #{tpu_custom_call.1} parent=1 // pred_check
      _
    $region35: #{tpu_custom_call.1} parent=1 // pred_check_branch
      %37 = sbr.rel (0) target = $region37
    $region36: #{tpu_custom_call.1} parent=1 // pred_region
      _
    $region37: #{tpu_custom_call.1} parent=1 // pred_fallthru
      _
    // Predicated region
    $region38: #{tpu_custom_call.1} parent=1 // pred_check
      _
    $region39: #{tpu_custom_call.1} parent=1 // pred_check_branch
      %39 = sbr.rel (0) target = $region41
    $region40: #{tpu_custom_call.1} parent=1 // pred_region
      _
    $region41: #{tpu_custom_call.1} parent=1 // pred_fallthru
      _
    // Predicated region
    $region42: #{tpu_custom_call.1} parent=1 // pred_check
      _
    $region43: #{tpu_custom_call.1} parent=1 // pred_check_branch
      %41 = sbr.rel (0) target = $region45
    $region44: #{tpu_custom_call.1} parent=1 // pred_region
      _
    $region45: #{tpu_custom_call.1} parent=1 // pred_fallthru
      _
    // Predicated region
    $region46: #{tpu_custom_call.1} parent=1 // pred_check
      _
    $region47: #{tpu_custom_call.1} parent=1 // pred_check_branch
      %43 = sbr.rel (0) target = $region49
    $region48: #{tpu_custom_call.1} parent=1 // pred_region
      _
    $region49: #{tpu_custom_call.1} parent=1 // pred_fallthru
      _
    // Predicated region
    $region50: #{tpu_custom_call.1} parent=1 // pred_check
      _
    $region51: #{tpu_custom_call.1} parent=1 // pred_check_branch
      %45 = sbr.rel (0) target = $region53
    $region52: #{tpu_custom_call.1} parent=1 // pred_region
      _
    $region53: #{tpu_custom_call.1} parent=1 // pred_fallthru
      _
    // Predicated region
    $region54: #{tpu_custom_call.1} parent=1 // pred_check
      _
    $region55: #{tpu_custom_call.1} parent=1 // pred_check_branch
      %47 = sbr.rel (0) target = $region57
    $region56: #{tpu_custom_call.1} parent=1 // pred_region
      _
    $region57: #{tpu_custom_call.1} parent=1 // pred_fallthru
      _
    %v49 = vld [vmem:[%s0] sm:$0xf]
    %v50 = vld [vmem:[%s0 + $0x4] sm:$0xf]
    %v51 = vld [vmem:[%s1] sm:$0xf]
    %v52 = vld [vmem:[%s1 + $0x4] sm:$0xf]
    %v53 = vld [vmem:[%s1 + $0x8] sm:$0xf]
    %v54 = vld [vmem:[%s1 + $0xc] sm:$0xf]
    %v55 = vld [vmem:[%s1 + $0x10] sm:$0xf]
    %v56 = vld [vmem:[%s1 + $0x14] sm:$0xf]
    %v57 = vld [vmem:[%s1 + $0x18] sm:$0xf]
    %v58 = vld [vmem:[%s1 + $0x1c] sm:$0xf]
    %v59 = vld [vmem:[%s1 + $0x20] sm:$0xf]
    %v60 = vld [vmem:[%s1 + $0x24] sm:$0xf]
    %v61 = vld [vmem:[%s1 + $0x28] sm:$0xf]
    %v62 = vld [vmem:[%s1 + $0x2c] sm:$0xf]
    %v63 = vld [vmem:[%s1 + $0x30] sm:$0xf]
    %v64 = vld [vmem:[%s1 + $0x34] sm:$0xf]
    %v65 = vld [vmem:[%s1 + $0x38] sm:$0xf]
    %v66 = vld [vmem:[%s1 + $0x3c] sm:$0xf]
    %v67 = vld [vmem:[%s1 + $0x40] sm:$0xf]
    %v68 = vld [vmem:[%s1 + $0x44] sm:$0xf]
    %v69 = vld [vmem:[%s1 + $0x48] sm:$0xf]
    %v70 = vld [vmem:[%s1 + $0x4c] sm:$0xf]
    %v71 = vld [vmem:[%s1 + $0x50] sm:$0xf]
    %v72 = vld [vmem:[%s1 + $0x54] sm:$0xf]
    %v73 = vld [vmem:[%s1 + $0x58] sm:$0xf]
    %v74 = vld [vmem:[%s1 + $0x5c] sm:$0xf]
    %v75 = vld [vmem:[%s1 + $0x60] sm:$0xf]
    %v76 = vld [vmem:[%s1 + $0x64] sm:$0xf]
    %v77 = vld [vmem:[%s1 + $0x68] sm:$0xf]
    %v78 = vld [vmem:[%s1 + $0x6c] sm:$0xf]
    %v79 = vld [vmem:[%s1 + $0x70] sm:$0xf]
    %v80 = vld [vmem:[%s1 + $0x74] sm:$0xf]
    %v81 = vld [vmem:[%s1 + $0x78] sm:$0xf]
    %v82 = vld [vmem:[%s1 + $0x7c] sm:$0xf]
    %v83 = vld [vmem:[%s2] sm:$0x1]
    %v85 = vlaneseq
    %v86 = vshrl.u32 %v85, 7
    %v87 = vsub.s32 0, %v86
    %v88 = vrot.slane %v83, %v87
    %v92 = vcombine.low %v49, %v50
    %v94 = vunpack.c.l.s4 1983009808
    %v95 = vunpack.c.0.s8 %v94
    %v96 = vlaneseq
    %v97 = vshrl.u32 %v96, 7
    %v98 = vsub.s32 %v95, %v97
    %v99 = vrot.slane %v92, %v98
    %v100 = vcombine.high %v99, %v99
    %v135 = vunpack.c.l.b16 %v51
    %v136 = vunpack.c.l.b16 %v52
    %v137 = vunpack.c.l.b16 %v53
    %v138 = vunpack.c.l.b16 %v54
    %v139 = vunpack.c.l.b16 %v55
    %v140 = vunpack.c.l.b16 %v56
    %v141 = vunpack.c.l.b16 %v57
    %v142 = vunpack.c.l.b16 %v58
    %v143 = vunpack.c.l.b16 %v59
    %v144 = vunpack.c.l.b16 %v60
    %v145 = vunpack.c.l.b16 %v61
    %v146 = vunpack.c.l.b16 %v62
    %v147 = vunpack.c.l.b16 %v63
    %v148 = vunpack.c.l.b16 %v64
    %v149 = vunpack.c.l.b16 %v65
    %v150 = vunpack.c.l.b16 %v66
    %v151 = vunpack.c.l.b16 %v67
    %v152 = vunpack.c.l.b16 %v68
    %v153 = vunpack.c.l.b16 %v69
    %v154 = vunpack.c.l.b16 %v70
    %v155 = vunpack.c.l.b16 %v71
    %v156 = vunpack.c.l.b16 %v72
    %v157 = vunpack.c.l.b16 %v73
    %v158 = vunpack.c.l.b16 %v74
    %v159 = vunpack.c.l.b16 %v75
    %v160 = vunpack.c.l.b16 %v76
    %v161 = vunpack.c.l.b16 %v77
    %v162 = vunpack.c.l.b16 %v78
    %v163 = vunpack.c.l.b16 %v79
    %v164 = vunpack.c.l.b16 %v80
    %v165 = vunpack.c.l.b16 %v81
    %v166 = vunpack.c.l.b16 %v82
    %v167 = vpack.c.b16 %v136, %v135
    %v168 = vpack.c.b16 %v138, %v137
    %v169 = vpack.c.b16 %v140, %v139
    %v170 = vpack.c.b16 %v142, %v141
    %v171 = vpack.c.b16 %v144, %v143
    %v172 = vpack.c.b16 %v146, %v145
    %v173 = vpack.c.b16 %v148, %v147
    %v174 = vpack.c.b16 %v150, %v149
    %v175 = vpack.c.b16 %v152, %v151
    %v176 = vpack.c.b16 %v154, %v153
    %v177 = vpack.c.b16 %v156, %v155
    %v178 = vpack.c.b16 %v158, %v157
    %v179 = vpack.c.b16 %v160, %v159
    %v180 = vpack.c.b16 %v162, %v161
    %v181 = vpack.c.b16 %v164, %v163
    %v182 = vpack.c.b16 %v166, %v165
    %199 = vmatprep.subr.bf16.mxu0 0
    %200 = vmatpush1.bf16.msra.mxu0 %v167
    %201 = vmatprep.subr.bf16.mxu0 0
    %202 = vmatpush1.bf16.msra.mxu0 %v168
    %203 = vmatprep.subr.bf16.mxu0 0
    %204 = vmatpush1.bf16.msra.mxu0 %v169
    %205 = vmatprep.subr.bf16.mxu0 0
    %206 = vmatpush1.bf16.msra.mxu0 %v170
    %207 = vmatprep.subr.bf16.mxu0 0
    %208 = vmatpush1.bf16.msra.mxu0 %v171
    %209 = vmatprep.subr.bf16.mxu0 0
    %210 = vmatpush1.bf16.msra.mxu0 %v172
    %211 = vmatprep.subr.bf16.mxu0 0
    %212 = vmatpush1.bf16.msra.mxu0 %v173
    %213 = vmatprep.subr.bf16.mxu0 0
    %214 = vmatpush1.bf16.msra.mxu0 %v174
    %215 = vmatprep.subr.bf16.mxu0 0
    %216 = vmatpush1.bf16.msra.mxu0 %v175
    %217 = vmatprep.subr.bf16.mxu0 0
    %218 = vmatpush1.bf16.msra.mxu0 %v176
    %219 = vmatprep.subr.bf16.mxu0 0
    %220 = vmatpush1.bf16.msra.mxu0 %v177
    %221 = vmatprep.subr.bf16.mxu0 0
    %222 = vmatpush1.bf16.msra.mxu0 %v178
    %223 = vmatprep.subr.bf16.mxu0 0
    %224 = vmatpush1.bf16.msra.mxu0 %v179
    %225 = vmatprep.subr.bf16.mxu0 0
    %226 = vmatpush1.bf16.msra.mxu0 %v180
    %227 = vmatprep.subr.bf16.mxu0 0
    %228 = vmatpush1.bf16.msra.mxu0 %v181
    %229 = vmatprep.subr.bf16.mxu0 0
    %230 = vmatpush1.bf16.msra.mxu0 %v182
    %231 = vmatprep.mubr.bf16.mxu0 %v100
    %232 = vmatmul.mubr.bf16.gmra.mrb[0].mxu0 %v99
    %v233 = vpop.f32.mrb[0].mxu0
    %v234 = vadd.f32 %v88, %v233
    %v235 = vpop.f32.mrb[0].mxu0
    %v236 = vpop.f32.mrb[0].mxu0
    %v237 = vpop.f32.mrb[0].mxu0
    %238 = vdwg.mxu0
    %v239 = vmul.f32 %v234, 0.5
    %v240 = vmul.f32 %v234, 0.70710677
    %v241 = verf.f32.pop %v240
    %v242 = vadd.f32 %v241, 1.0
    %v243 = vmul.f32 %v239, %v242
    %v244 = vpack.c.bf16 %v243, %v243
    %v245 = vld [vmem:[%s3] sm:$0xff]
    %v246 = vld [vmem:[%s3 + $0x8] sm:$0xff]
    %v247 = vld [vmem:[%s3 + $0x10] sm:$0xff]
    %v248 = vld [vmem:[%s3 + $0x18] sm:$0xff]
    %v249 = vld [vmem:[%s4] sm:$0x3]
    %v251 = vlaneseq
    %v252 = vshrl.u32 %v251, 7
    %v253 = vsub.s32 0, %v252
    %v254 = vrot.slane %v249, %v253
    %v255 = vlaneseq
    %v256 = vshrl.u32 %v255, 7
    %v257 = vsub.s32 1, %v256
    %v258 = vrot.slane %v249, %v257
    %v265 = vunpack.c.l.b16 %v245
    %v266 = vunpack.c.h.b16 %v245
    %v267 = vunpack.c.l.b16 %v246
    %v268 = vunpack.c.h.b16 %v246
    %v269 = vunpack.c.l.b16 %v247
    %v270 = vunpack.c.h.b16 %v247
    %v271 = vunpack.c.l.b16 %v248
    %v272 = vunpack.c.h.b16 %v248
    %v273 = vpack.c.b16 %v267, %v265
    %v274 = vpack.c.b16 %v268, %v266
    %v275 = vpack.c.b16 %v271, %v269
    %v276 = vpack.c.b16 %v272, %v270
    %vm281 = vcmask 261120
    %v283 = vsel %vm281, %v244, 0
    %285 = vmatprep.subr.bf16.mxu0 %v274
    %286 = vmatpush1.bf16.msra.mxu0 %v273
    %287 = vmatprep.subr.bf16.mxu0 %v276
    %288 = vmatpush1.bf16.msra.mxu0 %v275
    %289 = vmatprep.subr.bf16.mxu0 0
    %290 = vmatpush1.bf16.msra.mxu0 0
    %291 = vmatprep.subr.bf16.mxu0 0
    %292 = vmatpush1.bf16.msra.mxu0 0
    %293 = vmatprep.subr.bf16.mxu0 0
    %294 = vmatpush1.bf16.msra.mxu0 0
    %295 = vmatprep.subr.bf16.mxu0 0
    %296 = vmatpush1.bf16.msra.mxu0 0
    %297 = vmatprep.subr.bf16.mxu0 0
    %298 = vmatpush1.bf16.msra.mxu0 0
    %299 = vmatprep.subr.bf16.mxu0 0
    %300 = vmatpush1.bf16.msra.mxu0 0
    %301 = vmatprep.subr.bf16.mxu0 0
    %302 = vmatpush1.bf16.msra.mxu0 0
    %303 = vmatprep.subr.bf16.mxu0 0
    %304 = vmatpush1.bf16.msra.mxu0 0
    %305 = vmatprep.subr.bf16.mxu0 0
    %306 = vmatpush1.bf16.msra.mxu0 0
    %307 = vmatprep.subr.bf16.mxu0 0
    %308 = vmatpush1.bf16.msra.mxu0 0
    %309 = vmatprep.subr.bf16.mxu0 0
    %310 = vmatpush1.bf16.msra.mxu0 0
    %311 = vmatprep.subr.bf16.mxu0 0
    %312 = vmatpush1.bf16.msra.mxu0 0
    %313 = vmatprep.subr.bf16.mxu0 0
    %314 = vmatpush1.bf16.msra.mxu0 0
    %315 = vmatprep.subr.bf16.mxu0 0
    %316 = vmatpush1.bf16.msra.mxu0 0
    %317 = vmatprep.mubr.bf16.mxu0 0
    %318 = vmatmul.mubr.bf16.gmra.mrb[0].mxu0 %v283
    %v319 = vpop.f32.mrb[0].mxu0
    %v320 = vadd.f32 %v254, %v319
    %v321 = vpop.f32.mrb[0].mxu0
    %v322 = vadd.f32 %v258, %v321
    %v323 = vpop.f32.mrb[0].mxu0
    %v324 = vpop.f32.mrb[0].mxu0
    %325 = vdwg.mxu0
    %v326 = vld [vmem:[%s5] sm:$0xf]
    %v327 = vld [vmem:[%s5 + $0x4] sm:$0xf]
    %v328 = vld [vmem:[%s5 + $0x8] sm:$0xf]
    %v329 = vld [vmem:[%s5 + $0xc] sm:$0xf]
    %v330 = vld [vmem:[%s5 + $0x10] sm:$0xf]
    %v331 = vld [vmem:[%s5 + $0x14] sm:$0xf]
    %v332 = vld [vmem:[%s5 + $0x18] sm:$0xf]
    %v333 = vld [vmem:[%s5 + $0x1c] sm:$0xf]
    %v334 = vld [vmem:[%s5 + $0x20] sm:$0xf]
    %v335 = vld [vmem:[%s5 + $0x24] sm:$0xf]
    %v336 = vld [vmem:[%s5 + $0x28] sm:$0xf]
    %v337 = vld [vmem:[%s5 + $0x2c] sm:$0xf]
    %v338 = vld [vmem:[%s5 + $0x30] sm:$0xf]
    %v339 = vld [vmem:[%s5 + $0x34] sm:$0xf]
    %v340 = vld [vmem:[%s5 + $0x38] sm:$0xf]
    %v341 = vld [vmem:[%s5 + $0x3c] sm:$0xf]
    %v342 = vld [vmem:[%s5 + $0x40] sm:$0xf]
    %v343 = vld [vmem:[%s5 + $0x44] sm:$0xf]
    %v344 = vld [vmem:[%s5 + $0x48] sm:$0xf]
    %v345 = vld [vmem:[%s5 + $0x4c] sm:$0xf]
    %v346 = vld [vmem:[%s5 + $0x50] sm:$0xf]
    %v347 = vld [vmem:[%s5 + $0x54] sm:$0xf]
    %v348 = vld [vmem:[%s5 + $0x58] sm:$0xf]
    %v349 = vld [vmem:[%s5 + $0x5c] sm:$0xf]
    %v350 = vld [vmem:[%s5 + $0x60] sm:$0xf]
    %v351 = vld [vmem:[%s5 + $0x64] sm:$0xf]
    %v352 = vld [vmem:[%s5 + $0x68] sm:$0xf]
    %v353 = vld [vmem:[%s5 + $0x6c] sm:$0xf]
    %v354 = vld [vmem:[%s5 + $0x70] sm:$0xf]
    %v355 = vld [vmem:[%s5 + $0x74] sm:$0xf]
    %v356 = vld [vmem:[%s5 + $0x78] sm:$0xf]
    %v357 = vld [vmem:[%s5 + $0x7c] sm:$0xf]
    %v358 = vld [vmem:[%s6] sm:$0x1]
    %v360 = vlaneseq
    %v361 = vshrl.u32 %v360, 7
    %v362 = vsub.s32 0, %v361
    %v363 = vrot.slane %v358, %v362
    %v397 = vunpack.c.l.b16 %v326
    %v398 = vunpack.c.l.b16 %v327
    %v399 = vunpack.c.l.b16 %v328
    %v400 = vunpack.c.l.b16 %v329
    %v401 = vunpack.c.l.b16 %v330
    %v402 = vunpack.c.l.b16 %v331
    %v403 = vunpack.c.l.b16 %v332
    %v404 = vunpack.c.l.b16 %v333
    %v405 = vunpack.c.l.b16 %v334
    %v406 = vunpack.c.l.b16 %v335
    %v407 = vunpack.c.l.b16 %v336
    %v408 = vunpack.c.l.b16 %v337
    %v409 = vunpack.c.l.b16 %v338
    %v410 = vunpack.c.l.b16 %v339
    %v411 = vunpack.c.l.b16 %v340
    %v412 = vunpack.c.l.b16 %v341
    %v413 = vunpack.c.l.b16 %v342
    %v414 = vunpack.c.l.b16 %v343
    %v415 = vunpack.c.l.b16 %v344
    %v416 = vunpack.c.l.b16 %v345
    %v417 = vunpack.c.l.b16 %v346
    %v418 = vunpack.c.l.b16 %v347
    %v419 = vunpack.c.l.b16 %v348
    %v420 = vunpack.c.l.b16 %v349
    %v421 = vunpack.c.l.b16 %v350
    %v422 = vunpack.c.l.b16 %v351
    %v423 = vunpack.c.l.b16 %v352
    %v424 = vunpack.c.l.b16 %v353
    %v425 = vunpack.c.l.b16 %v354
    %v426 = vunpack.c.l.b16 %v355
    %v427 = vunpack.c.l.b16 %v356
    %v428 = vunpack.c.l.b16 %v357
    %v429 = vpack.c.b16 %v398, %v397
    %v430 = vpack.c.b16 %v400, %v399
    %v431 = vpack.c.b16 %v402, %v401
    %v432 = vpack.c.b16 %v404, %v403
    %v433 = vpack.c.b16 %v406, %v405
    %v434 = vpack.c.b16 %v408, %v407
    %v435 = vpack.c.b16 %v410, %v409
    %v436 = vpack.c.b16 %v412, %v411
    %v437 = vpack.c.b16 %v414, %v413
    %v438 = vpack.c.b16 %v416, %v415
    %v439 = vpack.c.b16 %v418, %v417
    %v440 = vpack.c.b16 %v420, %v419
    %v441 = vpack.c.b16 %v422, %v421
    %v442 = vpack.c.b16 %v424, %v423
    %v443 = vpack.c.b16 %v426, %v425
    %v444 = vpack.c.b16 %v428, %v427
    %461 = vmatprep.subr.bf16.mxu0 0
    %462 = vmatpush1.bf16.msra.mxu0 %v429
    %463 = vmatprep.subr.bf16.mxu0 0
    %464 = vmatpush1.bf16.msra.mxu0 %v430
    %465 = vmatprep.subr.bf16.mxu0 0
    %466 = vmatpush1.bf16.msra.mxu0 %v431
    %467 = vmatprep.subr.bf16.mxu0 0
    %468 = vmatpush1.bf16.msra.mxu0 %v432
    %469 = vmatprep.subr.bf16.mxu0 0
    %470 = vmatpush1.bf16.msra.mxu0 %v433
    %471 = vmatprep.subr.bf16.mxu0 0
    %472 = vmatpush1.bf16.msra.mxu0 %v434
    %473 = vmatprep.subr.bf16.mxu0 0
    %474 = vmatpush1.bf16.msra.mxu0 %v435
    %475 = vmatprep.subr.bf16.mxu0 0
    %476 = vmatpush1.bf16.msra.mxu0 %v436
    %477 = vmatprep.subr.bf16.mxu0 0
    %478 = vmatpush1.bf16.msra.mxu0 %v437
    %479 = vmatprep.subr.bf16.mxu0 0
    %480 = vmatpush1.bf16.msra.mxu0 %v438
    %481 = vmatprep.subr.bf16.mxu0 0
    %482 = vmatpush1.bf16.msra.mxu0 %v439
    %483 = vmatprep.subr.bf16.mxu0 0
    %484 = vmatpush1.bf16.msra.mxu0 %v440
    %485 = vmatprep.subr.bf16.mxu0 0
    %486 = vmatpush1.bf16.msra.mxu0 %v441
    %487 = vmatprep.subr.bf16.mxu0 0
    %488 = vmatpush1.bf16.msra.mxu0 %v442
    %489 = vmatprep.subr.bf16.mxu0 0
    %490 = vmatpush1.bf16.msra.mxu0 %v443
    %491 = vmatprep.subr.bf16.mxu0 0
    %492 = vmatpush1.bf16.msra.mxu0 %v444
    %493 = vmatprep.mubr.bf16.mxu0 %v100
    %494 = vmatmul.mubr.bf16.gmra.mrb[0].mxu0 %v99
    %v495 = vpop.f32.mrb[0].mxu0
    %v496 = vadd.f32 %v363, %v495
    %v497 = vpop.f32.mrb[0].mxu0
    %v498 = vpop.f32.mrb[0].mxu0
    %v499 = vpop.f32.mrb[0].mxu0
    %500 = vdwg.mxu0
    %v501 = vmul.f32 %v496, 0.5
    %v502 = vmul.f32 %v496, 0.70710677
    %v503 = verf.f32.pop %v502
    %v504 = vadd.f32 %v503, 1.0
    %v505 = vmul.f32 %v501, %v504
    %v506 = vpack.c.bf16 %v505, %v505
    %v507 = vld [vmem:[%s7] sm:$0xff]
    %v508 = vld [vmem:[%s7 + $0x8] sm:$0xff]
    %v509 = vld [vmem:[%s7 + $0x10] sm:$0xff]
    %v510 = vld [vmem:[%s7 + $0x18] sm:$0xff]
    %v511 = vld [vmem:[%s8] sm:$0x3]
    %v513 = vlaneseq
    %v514 = vshrl.u32 %v513, 7
    %v515 = vsub.s32 0, %v514
    %v516 = vrot.slane %v511, %v515
    %v517 = vlaneseq
    %v518 = vshrl.u32 %v517, 7
    %v519 = vsub.s32 1, %v518
    %v520 = vrot.slane %v511, %v519
    %v527 = vunpack.c.l.b16 %v507
    %v528 = vunpack.c.h.b16 %v507
    %v529 = vunpack.c.l.b16 %v508
    %v530 = vunpack.c.h.b16 %v508
    %v531 = vunpack.c.l.b16 %v509
    %v532 = vunpack.c.h.b16 %v509
    %v533 = vunpack.c.l.b16 %v510
    %v534 = vunpack.c.h.b16 %v510
    %v535 = vpack.c.b16 %v529, %v527
    %v536 = vpack.c.b16 %v530, %v528
    %v537 = vpack.c.b16 %v533, %v531
    %v538 = vpack.c.b16 %v534, %v532
    %v544 = vsel %vm281, %v506, 0
    %546 = vmatprep.subr.bf16.mxu0 %v536
    %547 = vmatpush1.bf16.msra.mxu0 %v535
    %548 = vmatprep.subr.bf16.mxu0 %v538
    %549 = vmatpush1.bf16.msra.mxu0 %v537
    %550 = vmatprep.subr.bf16.mxu0 0
    %551 = vmatpush1.bf16.msra.mxu0 0
    %552 = vmatprep.subr.bf16.mxu0 0
    %553 = vmatpush1.bf16.msra.mxu0 0
    %554 = vmatprep.subr.bf16.mxu0 0
    %555 = vmatpush1.bf16.msra.mxu0 0
    %556 = vmatprep.subr.bf16.mxu0 0
    %557 = vmatpush1.bf16.msra.mxu0 0
    %558 = vmatprep.subr.bf16.mxu0 0
    %559 = vmatpush1.bf16.msra.mxu0 0
    %560 = vmatprep.subr.bf16.mxu0 0
    %561 = vmatpush1.bf16.msra.mxu0 0
    %562 = vmatprep.subr.bf16.mxu0 0
    %563 = vmatpush1.bf16.msra.mxu0 0
    %564 = vmatprep.subr.bf16.mxu0 0
    %565 = vmatpush1.bf16.msra.mxu0 0
    %566 = vmatprep.subr.bf16.mxu0 0
    %567 = vmatpush1.bf16.msra.mxu0 0
    %568 = vmatprep.subr.bf16.mxu0 0
    %569 = vmatpush1.bf16.msra.mxu0 0
    %570 = vmatprep.subr.bf16.mxu0 0
    %571 = vmatpush1.bf16.msra.mxu0 0
    %572 = vmatprep.subr.bf16.mxu0 0
    %573 = vmatpush1.bf16.msra.mxu0 0
    %574 = vmatprep.subr.bf16.mxu0 0
    %575 = vmatpush1.bf16.msra.mxu0 0
    %576 = vmatprep.subr.bf16.mxu0 0
    %577 = vmatpush1.bf16.msra.mxu0 0
    %578 = vmatprep.mubr.bf16.mxu0 0
    %579 = vmatmul.mubr.bf16.gmra.mrb[0].mxu0 %v544
    %v580 = vpop.f32.mrb[0].mxu0
    %v581 = vadd.f32 %v516, %v580
    %v582 = vpop.f32.mrb[0].mxu0
    %v583 = vadd.f32 %v520, %v582
    %v584 = vpop.f32.mrb[0].mxu0
    %v585 = vpop.f32.mrb[0].mxu0
    %586 = vdwg.mxu0
    %v587 = vld [vmem:[%s9] sm:$0x3]
    %v588 = vld [vmem:[%s10] sm:$0x3]
    %v589 = vadd.f32 %v320, %v322
    %590 = vadd.xlane.f32.xlu0 %v589
    %v591 = vpop.xlane.xlu0 %590
    %v592 = vmul.f32 %v320, %v320
    %v593 = vmul.f32 %v322, %v322
    %v594 = vadd.f32 %v592, %v593
    %595 = vadd.xlane.f32.xlu0 %v594
    %v596 = vpop.xlane.xlu0 %595
    %v597 = vmul.f32 %v591, 0.00390625
    %v598 = vmul.f32 %v596, 0.00390625
    %v599 = vmul.f32 %v597, %v597
    %v600 = vsub.f32 %v598, %v599
    %v601 = vmax.f32 %v600, 0.0
    %v602 = vsub.f32 %v320, %v597
    %v603 = vsub.f32 %v322, %v597
    %v604 = vadd.f32 %v601, 1e-05
    %v605 = vrsqrt.pop %v604
    %v606 = vmul.f32 %v602, %v605
    %v607 = vmul.f32 %v603, %v605
    %v609 = vlaneseq
    %v610 = vshrl.u32 %v609, 7
    %v611 = vsub.s32 0, %v610
    %v612 = vrot.slane %v587, %v611
    %v613 = vlaneseq
    %v614 = vshrl.u32 %v613, 7
    %v615 = vsub.s32 1, %v614
    %v616 = vrot.slane %v587, %v615
    %v619 = vmul.f32 %v606, %v612
    %v620 = vmul.f32 %v607, %v616
    %v622 = vlaneseq
    %v623 = vshrl.u32 %v622, 7
    %v624 = vsub.s32 0, %v623
    %v625 = vrot.slane %v588, %v624
    %v626 = vlaneseq
    %v627 = vshrl.u32 %v626, 7
    %v628 = vsub.s32 1, %v627
    %v629 = vrot.slane %v588, %v628
    %v632 = vadd.f32 %v619, %v625
    %v633 = vadd.f32 %v620, %v629
    %v634 = vmul.f32 %v632, 0.5
    %v635 = vmul.f32 %v633, 0.5
    %v636 = vmul.f32 %v632, 0.70710677
    %v637 = vmul.f32 %v633, 0.70710677
    %v638 = verf.f32.pop %v636
    %v639 = verf.f32.pop %v637
    %v640 = vadd.f32 %v638, 1.0
    %v641 = vadd.f32 %v639, 1.0
    %v642 = vmul.f32 %v634, %v640
    %v643 = vmul.f32 %v635, %v641
    %v644 = vpack.c.bf16 %v642, %v642
    %v645 = vpack.c.bf16 %v643, %v643
    %v646 = vadd.f32 %v581, %v583
    %647 = vadd.xlane.f32.xlu0 %v646
    %v648 = vpop.xlane.xlu0 %647
    %v649 = vmul.f32 %v581, %v581
    %v650 = vmul.f32 %v583, %v583
    %v651 = vadd.f32 %v649, %v650
    %652 = vadd.xlane.f32.xlu0 %v651
    %v653 = vpop.xlane.xlu0 %652
    %v654 = vmul.f32 %v648, 0.00390625
    %v655 = vmul.f32 %v653, 0.00390625
    %v656 = vmul.f32 %v654, %v654
    %v657 = vsub.f32 %v655, %v656
    %v658 = vmax.f32 %v657, 0.0
    %v659 = vsub.f32 %v581, %v654
    %v660 = vsub.f32 %v583, %v654
    %v661 = vadd.f32 %v658, 1e-05
    %v662 = vrsqrt.pop %v661
    %v663 = vmul.f32 %v659, %v662
    %v664 = vmul.f32 %v660, %v662
    %v665 = vmul.f32 %v663, %v612
    %v666 = vmul.f32 %v664, %v616
    %v667 = vadd.f32 %v665, %v625
    %v668 = vadd.f32 %v666, %v629
    %v669 = vmul.f32 %v667, 0.5
    %v670 = vmul.f32 %v668, 0.5
    %v671 = vmul.f32 %v667, 0.70710677
    %v672 = vmul.f32 %v668, 0.70710677
    %v673 = verf.f32.pop %v671
    %v674 = verf.f32.pop %v672
    %v675 = vadd.f32 %v673, 1.0
    %v676 = vadd.f32 %v674, 1.0
    %v677 = vmul.f32 %v669, %v675
    %v678 = vmul.f32 %v670, %v676
    %v679 = vpack.c.bf16 %v677, %v677
    %v680 = vpack.c.bf16 %v678, %v678
    %v681 = vld [vmem:[%s11] sm:$0x3]
    %v682 = vld [vmem:[%s12] sm:$0x3]
    %v683 = vld [vmem:[%s13] sm:$0xf]
    %v686 = vcombine.low %v644, %v645
    %v688 = vunpack.c.l.s4 1983009808
    %v689 = vunpack.c.0.s8 %v688
    %v690 = vlaneseq
    %v691 = vshrl.u32 %v690, 7
    %v692 = vsub.s32 %v689, %v691
    %v693 = vrot.slane %v686, %v692
    %v694 = vcombine.high %v693, %v693
    %v697 = vcombine.low %v679, %v680
    %v699 = vunpack.c.l.s4 1983009808
    %v700 = vunpack.c.0.s8 %v699
    %v701 = vlaneseq
    %v702 = vshrl.u32 %v701, 7
    %v703 = vsub.s32 %v700, %v702
    %v704 = vrot.slane %v697, %v703
    %v705 = vcombine.high %v704, %v704
    %v707 = vunpack.c.l.s4 1983009808
    %v708 = vunpack.c.0.s8 %v707
    %v709 = vlaneseq
    %v710 = vshrl.u32 %v709, 7
    %v711 = vsub.s32 %v708, %v710
    %v712 = vrot.slane %v704, %v711
    %v713 = vcombine.high %v712, %v712
    %vm714 = vcmask 31744
    %v716 = vsel %vm714, %v682, 0
    %vm718 = vcmask 1041408
    %v720 = vsel %vm718, %v712, 0
    %v723 = vsel %vm718, %v713, 0
    %725 = vmatprep.subr.bf16.mxu0 %v723
    %726 = vmatpush1.bf16.msra.mxu0 %v720
    %727 = vmatprep.subr.bf16.mxu0 0
    %728 = vmatpush1.bf16.msra.mxu0 0
    %729 = vmatprep.subr.bf16.mxu0 0
    %730 = vmatpush1.bf16.msra.mxu0 0
    %731 = vmatprep.subr.bf16.mxu0 0
    %732 = vmatpush1.bf16.msra.mxu0 0
    %733 = vmatprep.subr.bf16.mxu0 0
    %734 = vmatpush1.bf16.msra.mxu0 0
    %735 = vmatprep.subr.bf16.mxu0 0
    %736 = vmatpush1.bf16.msra.mxu0 0
    %737 = vmatprep.subr.bf16.mxu0 0
    %738 = vmatpush1.bf16.msra.mxu0 0
    %739 = vmatprep.subr.bf16.mxu0 0
    %740 = vmatpush1.bf16.msra.mxu0 0
    %741 = vmatprep.subr.bf16.mxu0 0
    %742 = vmatpush1.bf16.msra.mxu0 0
    %743 = vmatprep.subr.bf16.mxu0 0
    %744 = vmatpush1.bf16.msra.mxu0 0
    %745 = vmatprep.subr.bf16.mxu0 0
    %746 = vmatpush1.bf16.msra.mxu0 0
    %747 = vmatprep.subr.bf16.mxu0 0
    %748 = vmatpush1.bf16.msra.mxu0 0
    %749 = vmatprep.subr.bf16.mxu0 0
    %750 = vmatpush1.bf16.msra.mxu0 0
    %751 = vmatprep.subr.bf16.mxu0 0
    %752 = vmatpush1.bf16.msra.mxu0 0
    %753 = vmatprep.subr.bf16.mxu0 0
    %754 = vmatpush1.bf16.msra.mxu0 0
    %755 = vmatprep.subr.bf16.mxu0 0
    %756 = vmatpush1.bf16.msra.mxu0 0
    %757 = vmatprep.mubr.bf16.mxu0 0
    %758 = vmatmul.mubr.bf16.gmra.mrb[0].mxu0 %v716
    %v759 = vpop.f32.mrb[0].mxu0
    %v760 = vadd.f32 0.0, %v759
    %v761 = vpop.f32.mrb[0].mxu0
    %v762 = vadd.f32 0.0, %v761
    %v763 = vpop.f32.mrb[0].mxu0
    %v764 = vpop.f32.mrb[0].mxu0
    %765 = vdwg.mxu0
    %v767 = vunpack.c.l.s4 1983009808
    %v768 = vunpack.c.0.s8 %v767
    %v769 = vlaneseq
    %v770 = vshrl.u32 %v769, 7
    %v771 = vsub.s32 %v768, %v770
    %v772 = vrot.slane %v693, %v771
    %v773 = vcombine.high %v772, %v772
    %v775 = vsel %vm714, %v681, 0
    %v778 = vsel %vm718, %v772, 0
    %v781 = vsel %vm718, %v773, 0
    %783 = vmatprep.subr.bf16.mxu0 %v781
    %784 = vmatpush1.bf16.msra.mxu0 %v778
    %785 = vmatprep.subr.bf16.mxu0 0
    %786 = vmatpush1.bf16.msra.mxu0 0
    %787 = vmatprep.subr.bf16.mxu0 0
    %788 = vmatpush1.bf16.msra.mxu0 0
    %789 = vmatprep.subr.bf16.mxu0 0
    %790 = vmatpush1.bf16.msra.mxu0 0
    %791 = vmatprep.subr.bf16.mxu0 0
    %792 = vmatpush1.bf16.msra.mxu0 0
    %793 = vmatprep.subr.bf16.mxu0 0
    %794 = vmatpush1.bf16.msra.mxu0 0
    %795 = vmatprep.subr.bf16.mxu0 0
    %796 = vmatpush1.bf16.msra.mxu0 0
    %797 = vmatprep.subr.bf16.mxu0 0
    %798 = vmatpush1.bf16.msra.mxu0 0
    %799 = vmatprep.subr.bf16.mxu0 0
    %800 = vmatpush1.bf16.msra.mxu0 0
    %801 = vmatprep.subr.bf16.mxu0 0
    %802 = vmatpush1.bf16.msra.mxu0 0
    %803 = vmatprep.subr.bf16.mxu0 0
    %804 = vmatpush1.bf16.msra.mxu0 0
    %805 = vmatprep.subr.bf16.mxu0 0
    %806 = vmatpush1.bf16.msra.mxu0 0
    %807 = vmatprep.subr.bf16.mxu0 0
    %808 = vmatpush1.bf16.msra.mxu0 0
    %809 = vmatprep.subr.bf16.mxu0 0
    %810 = vmatpush1.bf16.msra.mxu0 0
    %811 = vmatprep.subr.bf16.mxu0 0
    %812 = vmatpush1.bf16.msra.mxu0 0
    %813 = vmatprep.subr.bf16.mxu0 0
    %814 = vmatpush1.bf16.msra.mxu0 0
    %815 = vmatprep.mubr.bf16.mxu0 0
    %816 = vmatmul.mubr.bf16.gmra.mrb[0].mxu0 %v775
    %v817 = vpop.f32.mrb[0].mxu0
    %v818 = vadd.f32 %v760, %v817
    %v819 = vpop.f32.mrb[0].mxu0
    %v820 = vadd.f32 %v762, %v819
    %v821 = vpop.f32.mrb[0].mxu0
    %v822 = vpop.f32.mrb[0].mxu0
    %823 = vdwg.mxu0
    %825 = vset.pattern.permute.xlu0 0
    %826 = vperm.xlu0 %825, %v683
    %v827 = vpop.permute.xlu0 %826
    %v829 = vadd.f32 %v818, %v827
    %v830 = vadd.f32 %v820, %v827
    %v833 = vcombine.low %v829, %v830
    %835 = vst [vmem:[#allocation2] sm:$0xff] %v833
    %v837 = vunpack.c.l.s4 1983009808
    %v838 = vunpack.c.0.s8 %v837
    %v839 = vlaneseq
    %v840 = vshrl.u32 %v839, 7
    %v841 = vsub.s32 %v838, %v840
    %v842 = vrot.slane %v705, %v841
    %v843 = vcombine.high %v842, %v842
    %v845 = vsel %vm718, %v842, 0
    %v848 = vsel %vm718, %v843, 0
    %850 = vmatprep.subr.bf16.mxu0 %v848
    %851 = vmatpush1.bf16.msra.mxu0 %v845
    %852 = vmatprep.subr.bf16.mxu0 0
    %853 = vmatpush1.bf16.msra.mxu0 0
    %854 = vmatprep.subr.bf16.mxu0 0
    %855 = vmatpush1.bf16.msra.mxu0 0
    %856 = vmatprep.subr.bf16.mxu0 0
    %857 = vmatpush1.bf16.msra.mxu0 0
    %858 = vmatprep.subr.bf16.mxu0 0
    %859 = vmatpush1.bf16.msra.mxu0 0
    %860 = vmatprep.subr.bf16.mxu0 0
    %861 = vmatpush1.bf16.msra.mxu0 0
    %862 = vmatprep.subr.bf16.mxu0 0
    %863 = vmatpush1.bf16.msra.mxu0 0
    %864 = vmatprep.subr.bf16.mxu0 0
    %865 = vmatpush1.bf16.msra.mxu0 0
    %866 = vmatprep.subr.bf16.mxu0 0
    %867 = vmatpush1.bf16.msra.mxu0 0
    %868 = vmatprep.subr.bf16.mxu0 0
    %869 = vmatpush1.bf16.msra.mxu0 0
    %870 = vmatprep.subr.bf16.mxu0 0
    %871 = vmatpush1.bf16.msra.mxu0 0
    %872 = vmatprep.subr.bf16.mxu0 0
    %873 = vmatpush1.bf16.msra.mxu0 0
    %874 = vmatprep.subr.bf16.mxu0 0
    %875 = vmatpush1.bf16.msra.mxu0 0
    %876 = vmatprep.subr.bf16.mxu0 0
    %877 = vmatpush1.bf16.msra.mxu0 0
    %878 = vmatprep.subr.bf16.mxu0 0
    %879 = vmatpush1.bf16.msra.mxu0 0
    %880 = vmatprep.subr.bf16.mxu0 0
    %881 = vmatpush1.bf16.msra.mxu0 0
    %882 = vmatprep.mubr.bf16.mxu0 0
    %883 = vmatmul.mubr.bf16.gmra.mrb[0].mxu0 %v716
    %v884 = vpop.f32.mrb[0].mxu0
    %v885 = vadd.f32 0.0, %v884
    %v886 = vpop.f32.mrb[0].mxu0
    %v887 = vadd.f32 0.0, %v886
    %v888 = vpop.f32.mrb[0].mxu0
    %v889 = vpop.f32.mrb[0].mxu0
    %890 = vdwg.mxu0
    %v892 = vunpack.c.l.s4 1983009808
    %v893 = vunpack.c.0.s8 %v892
    %v894 = vlaneseq
    %v895 = vshrl.u32 %v894, 7
    %v896 = vsub.s32 %v893, %v895
    %v897 = vrot.slane %v694, %v896
    %v898 = vcombine.high %v897, %v897
    %v900 = vsel %vm718, %v897, 0
    %v903 = vsel %vm718, %v898, 0
    %905 = vmatprep.subr.bf16.mxu0 %v903
    %906 = vmatpush1.bf16.msra.mxu0 %v900
    %907 = vmatprep.subr.bf16.mxu0 0
    %908 = vmatpush1.bf16.msra.mxu0 0
    %909 = vmatprep.subr.bf16.mxu0 0
    %910 = vmatpush1.bf16.msra.mxu0 0
    %911 = vmatprep.subr.bf16.mxu0 0
    %912 = vmatpush1.bf16.msra.mxu0 0
    %913 = vmatprep.subr.bf16.mxu0 0
    %914 = vmatpush1.bf16.msra.mxu0 0
    %915 = vmatprep.subr.bf16.mxu0 0
    %916 = vmatpush1.bf16.msra.mxu0 0
    %917 = vmatprep.subr.bf16.mxu0 0
    %918 = vmatpush1.bf16.msra.mxu0 0
    %919 = vmatprep.subr.bf16.mxu0 0
    %920 = vmatpush1.bf16.msra.mxu0 0
    %921 = vmatprep.subr.bf16.mxu0 0
    %922 = vmatpush1.bf16.msra.mxu0 0
    %923 = vmatprep.subr.bf16.mxu0 0
    %924 = vmatpush1.bf16.msra.mxu0 0
    %925 = vmatprep.subr.bf16.mxu0 0
    %926 = vmatpush1.bf16.msra.mxu0 0
    %927 = vmatprep.subr.bf16.mxu0 0
    %928 = vmatpush1.bf16.msra.mxu0 0
    %929 = vmatprep.subr.bf16.mxu0 0
    %930 = vmatpush1.bf16.msra.mxu0 0
    %931 = vmatprep.subr.bf16.mxu0 0
    %932 = vmatpush1.bf16.msra.mxu0 0
    %933 = vmatprep.subr.bf16.mxu0 0
    %934 = vmatpush1.bf16.msra.mxu0 0
    %935 = vmatprep.subr.bf16.mxu0 0
    %936 = vmatpush1.bf16.msra.mxu0 0
    %937 = vmatprep.mubr.bf16.mxu0 0
    %938 = vmatmul.mubr.bf16.gmra.mrb[0].mxu0 %v775
    %v939 = vpop.f32.mrb[0].mxu0
    %v940 = vadd.f32 %v885, %v939
    %v941 = vpop.f32.mrb[0].mxu0
    %v942 = vadd.f32 %v887, %v941
    %v943 = vpop.f32.mrb[0].mxu0
    %v944 = vpop.f32.mrb[0].mxu0
    %945 = vdwg.mxu0
    %v946 = vadd.f32 %v940, %v827
    %v947 = vadd.f32 %v942, %v827
    %v950 = vcombine.low %v946, %v947
    %s952 = scalar_lea.vmem [#allocation2], 8
    %953 = vst [vmem:[%s952] sm:$0xff] %v950
    // Predicated region
    $region58: #{tpu_custom_call.1} parent=1 // pred_check
      _
    $region59: #{tpu_custom_call.1} parent=1 // pred_check_branch
      %955 = sbr.rel (0) target = $region61
    $region60: #{tpu_custom_call.1} parent=1 // pred_region
      %s957 = ssub.s32 256, 256
      %958 = vsyncadd [#allocation3], %s957
      %s959 = sshll.u32 [#allocation2], 4
      %s960 = int_to_ptr.vmem [resolvable:$true] %s959
      %965 = dma.vmem_to_hbm [thread:$0]  %s960, 256, %s14, [#allocation3], 128, 128, 8
    $region61: #{tpu_custom_call.1} parent=1 // pred_fallthru
      _
    // Predicated region
    $region62: #{tpu_custom_call.1} parent=1 // pred_check
      _
    $region63: #{tpu_custom_call.1} parent=1 // pred_check_branch
      %967 = sbr.rel (0) target = $region65
    $region64: #{tpu_custom_call.1} parent=1 // pred_region
      %968 = dma.done [#allocation3], 256
    $region65: #{tpu_custom_call.1} parent=1 // pred_fallthru
      _
    %969 = vsyncpa [#allocation3], 1

</llo_original>
